<compile_context>
chip_gen: v7x
topology: tpu7x:2x2x1
jax: 0.10.0
libtpu: 0.0.40
codegen_flags: <defaults>
</compile_context>

<pallas_src>
import jax
import jax.numpy as jnp
from jax.experimental import pallas as pl
from jax.experimental.pallas import tpu as pltpu

EPS = 1e-5


def _round_up(x, m):
    return ((x + m - 1) // m) * m


# --------------------------------------------------------------------------
# Fused kernel builder.  The (static) layer structure is closed over, so the
# Compose loop unrolls inside one kernel body.  Everything is in
# (feature, batch) layout:
#   coupling:  h     = tanh(W1T @ [z0 ; c] + b1)          (one fused GEMM)
#              log_s = tanh(W2sT @ h + b2s)
#              t     =      W2tT @ h + b2t
#              z1'   = z1 * exp(log_s) + t
#              ldj  += sum(log_s, axis=feature)
#   batchnorm: z'    = z * scale + shift                   (precomputed)
#              (log-det constant folded into one scalar, added at the end)
# --------------------------------------------------------------------------
def _build_fused_kernel(layer_meta, half, bn_ldj_const):
    def kernel(*refs):
        # refs = (z, c, ldj, *flat_layer_params, z_out, ldj_out)
        z_ref, c_ref, ldj_ref = refs[0], refs[1], refs[2]
        z_out_ref, ldj_out_ref = refs[-2], refs[-1]
        param_refs = refs[3:-2]

        # Split z once; carry the two (half, Bt) halves in registers.
        zl = z_ref[:half, :]
        zr = z_ref[half:, :]
        c = c_ref[...]                     # (C, Bt)
        ldj = ldj_ref[...]                 # (1, Bt)

        idx = 0
        for meta in layer_meta:
            if meta["type"] == "batchnorm":
                sl, sr, tl, tr = param_refs[idx:idx + 4]
                idx += 4
                zl = zl * sl[...] + tl[...]        # (half,Bt)*(half,1)+(half,1)
                zr = zr * sr[...] + tr[...]
            else:  # conditional affine coupling
                w1T, b1T, w2sT, b2sT, w2tT, b2tT = param_refs[idx:idx + 6]
                idx += 6
                z0, z1 = (zr, zl) if meta["flip"] else (zl, zr)
                zc = jnp.concatenate([z0, c], axis=0)          # (half+C, Bt)
                h = jnp.tanh(
                    jnp.dot(w1T[...], zc,
                            preferred_element_type=jnp.float32)
                    + b1T[...])                                # (H, Bt)
                log_s = jnp.tanh(
                    jnp.dot(w2sT[...], h,
                            preferred_element_type=jnp.float32)
                    + b2sT[...])                               # (half, Bt)
                t = (jnp.dot(w2tT[...], h,
                             preferred_element_type=jnp.float32)
                     + b2tT[...])                              # (half, Bt)
                z1n = z1 * jnp.exp(log_s) + t
                ldj = ldj + jnp.sum(log_s, axis=0, keepdims=True)
                if meta["flip"]:
                    zl = z1n
                else:
                    zr = z1n

        if bn_ldj_const != 0.0:
            ldj = ldj + jnp.float32(bn_ldj_const)

        # Direct half stores (no concat shuffle); lane-dense writeback.
        z_out_ref[:half, :] = zl
        z_out_ref[half:, :] = zr
        ldj_out_ref[...] = ldj

    return kernel


class Compose:
    """Mirrors Compose.forward: BatchNorm gets (z, ldj); others get (z, c, ldj).

    The whole stack runs as a single fused Pallas kernel (forward only).
    """

    def __init__(self, layers, batch_tile=1024):
        assert len(layers) > 0
        assert batch_tile % 128 == 0, "batch_tile must be a multiple of 128"
        self.batch_tile = batch_tile
        self.meta = []
        self.params = []        # flat list of per-layer parameter arrays
        bn_ldj = 0.0
        half = None

        for layer in layers:
            if layer["type"] == "batchnorm":
                mean, var = layer["mean"], layer["var"]
                log_gamma, beta = layer["log_gamma"], layer["beta"]
                d = mean.shape[-1]
                h = d // 2
                half = h if half is None else half
                assert half == h
                # Precompute: z' = z*scale + shift ; ldj += const (summed).
                inv_std = jax.lax.rsqrt(var + EPS)
                scale = (jnp.exp(log_gamma) * inv_std).reshape(d, 1)  # (D,1)
                shift = (beta - mean * jnp.exp(log_gamma) * inv_std
                         ).reshape(d, 1)                              # (D,1)
                bn_ldj += float(jnp.sum(log_gamma - 0.5 * jnp.log(var + EPS)))
                self.meta.append({"type": "batchnorm"})
                self.params += [scale[:h], scale[h:], shift[:h], shift[h:]]
            else:  # conditional affine coupling
                h = layer["w1z"].shape[0]
                half = h if half is None else half
                assert half == h
                # Fuse the [z0 ; c] projection into one GEMM; transpose all
                # weights for the (feature, batch) layout.
                w1 = jnp.concatenate([layer["w1z"], layer["w1c"]], axis=0)
                w1T = jnp.asarray(w1.T, jnp.float32)          # (H, half+C)
                b1T = jnp.asarray(layer["b1"].reshape(-1, 1), jnp.float32)
                w2sT = jnp.asarray(layer["w2s"].T, jnp.float32)  # (half, H)
                b2sT = jnp.asarray(layer["b2s"].reshape(-1, 1), jnp.float32)
                w2tT = jnp.asarray(layer["w2t"].T, jnp.float32)  # (half, H)
                b2tT = jnp.asarray(layer["b2t"].reshape(-1, 1), jnp.float32)
                self.meta.append({"type": "coupling",
                                  "flip": bool(layer["flip"])})
                self.params += [w1T, b1T, w2sT, b2sT, w2tT, b2tT]

        self.half = half
        self._kernel = _build_fused_kernel(self.meta, half, bn_ldj)

    def forward(self, z, c, log_df_dz):
        B, D = z.shape
        assert D == 2 * self.half, (D, self.half)
        C = c.shape[1]

        # Batch-on-lanes: present (feature, batch) slabs to the kernel.
        zT = jnp.asarray(z, jnp.float32).T                 # (D, B)
        cT = jnp.asarray(c, jnp.float32).T                 # (C, B)
        ldjT = jnp.asarray(log_df_dz, jnp.float32).reshape(1, B)

        # Tile the batch (lane) axis.  Tiles are either the full batch or a
        # multiple of 128 lanes; when the batch is big enough, use >= 2 grid
        # steps so v7x's two TensorCores both get work.
        bt = min(self.batch_tile, B)
        if bt == B and B >= 256:
            bt = _round_up(-(-B // 2), 128)
        grid = (pl.cdiv(B, bt),)

        def act_spec(rows):
            return pl.BlockSpec((rows, bt), lambda i: (0, i))

        in_specs = [act_spec(D), act_spec(C), act_spec(1)]
        for arr in self.params:
            nd = arr.ndim
            in_specs.append(pl.BlockSpec(arr.shape, lambda i, nd=nd: (0,) * nd))

        out_specs = (act_spec(D), act_spec(1))
        out_shape = (jax.ShapeDtypeStruct((D, B), jnp.float32),
                     jax.ShapeDtypeStruct((1, B), jnp.float32))

        z_out_t, ldj_out = pl.pallas_call(
            self._kernel,
            grid=grid,
            in_specs=in_specs,
            out_specs=out_specs,
            out_shape=out_shape,
            compiler_params=pltpu.CompilerParams(
                dimension_semantics=("parallel",)),
        )(zT, cT, ldjT, *self.params)
        return z_out_t.T, ldj_out.reshape(B)

    # TODO(synk): backward() (inverse pass) not implemented; forward only.


# --------------------------------------------------------------------------
# Parameter constructors (same "raw" layer format as the PyTorch layers).
# --------------------------------------------------------------------------
def _make_coupling_params(key, d, c_dim, hidden, flip):
    ks = jax.random.split(key, 7)
    half = d // 2
    n = lambda k, shape: 0.1 * jax.random.normal(k, shape, jnp.float32)
    return {
        "type": "coupling", "flip": flip,
        "w1z": n(ks[0], (half, hidden)),
        "w1c": n(ks[1], (c_dim, hidden)),
        "b1":  n(ks[2], (1, hidden)),
        "w2s": n(ks[3], (hidden, half)),
        "b2s": n(ks[4], (1, half)),
        "w2t": n(ks[5], (hidden, half)),
        "b2t": n(ks[6], (1, half)),
    }


def _make_batchnorm_params(key, d):
    k1, k2 = jax.random.split(key)
    return {
        "type": "batchnorm",
        "mean": 0.1 * jnp.arange(d, dtype=jnp.float32).reshape(1, d),
        "var": 1.0 + 0.05 * jnp.arange(d, dtype=jnp.float32).reshape(1, d),
        "log_gamma": 0.05 * jax.random.normal(k1, (1, d), jnp.float32),
        "beta": 0.05 * jax.random.normal(k2, (1, d), jnp.float32),
    }


# --------------------------------------------------------------------------
# Pure-JAX reference (mirrors the original per-layer math) for validation.
# --------------------------------------------------------------------------
def _reference_forward(layers, z, c, log_df_dz):
    ldj = log_df_dz
    for layer in layers:
        if layer["type"] == "batchnorm":
            var = layer["var"]
            inv_std = 1.0 / jnp.sqrt(var + EPS)
            z = ((z - layer["mean"]) * inv_std * jnp.exp(layer["log_gamma"])
                 + layer["beta"])
            ldj = ldj + jnp.sum(layer["log_gamma"] - 0.5 * jnp.log(var + EPS))
        else:
            half = z.shape[1] // 2
            if layer["flip"]:
                z0, z1 = z[:, half:], z[:, :half]
            else:
                z0, z1 = z[:, :half], z[:, half:]
            h = jnp.tanh(z0 @ layer["w1z"] + c @ layer["w1c"] + layer["b1"])
            log_s = jnp.tanh(h @ layer["w2s"] + layer["b2s"])
            t = h @ layer["w2t"] + layer["b2t"]
            z1n = z1 * jnp.exp(log_s) + t
            z = jnp.concatenate([z1n, z0] if layer["flip"] else [z0, z1n],
                                axis=1)
            ldj = ldj + jnp.sum(log_s, axis=1)
    return z, ldj


def _check(model, raw_layers, key, B, D, C_DIM):
    k1, k2 = jax.random.split(key)
    z = jax.random.normal(k1, (B, D), jnp.float32)
    c = jax.random.normal(k2, (B, C_DIM), jnp.float32)
    log_df_dz = jnp.zeros((B,), jnp.float32)

    z_out, ldj_out = model.forward(z, c, log_df_dz)
    jax.block_until_ready((z_out, ldj_out))

    z_ref, ldj_ref = _reference_forward(raw_layers, z, c, log_df_dz)

    assert z_out.shape == (B, D), z_out.shape
    assert ldj_out.shape == (B,), ldj_out.shape
    assert bool(jnp.all(jnp.isfinite(z_out)))
    assert bool(jnp.all(jnp.isfinite(ldj_out)))
    assert bool(jnp.allclose(z_out, z_ref, atol=1e-3, rtol=1e-3)), \
        float(jnp.max(jnp.abs(z_out - z_ref)))
    assert bool(jnp.allclose(ldj_out, ldj_ref, atol=1e-3, rtol=1e-3)), \
        float(jnp.max(jnp.abs(ldj_out - ldj_ref)))


if __name__ == "__main__":
    D, C_DIM, HIDDEN = 8, 4, 32
    keys = jax.random.split(jax.random.PRNGKey(0), 8)

    raw_layers = [
        _make_coupling_params(keys[0], D, C_DIM, HIDDEN, flip=False),
        _make_batchnorm_params(keys[1], D),
        _make_coupling_params(keys[2], D, C_DIM, HIDDEN, flip=True),
        _make_batchnorm_params(keys[3], D),
    ]
    model = Compose(raw_layers)

    # Small-batch path (single grid step, tile == full batch).
    _check(model, raw_layers, keys[4], B=8, D=D, C_DIM=C_DIM)
    # Tiled path (128-lane tiles, >= 2 parallel grid steps).
    _check(model, raw_layers, keys[5], B=512, D=D, C_DIM=C_DIM)

    print("KERNEL_OK")
</pallas_src>

<mosaic_0001>
module attributes {stable_mosaic.version = 11 : i64} {
  func.func @kernel(%arg0: i32, %arg1: memref<8x8xf32, #tpu.memory_space<vmem>>, %arg2: memref<4x8xf32, #tpu.memory_space<vmem>>, %arg3: memref<1x8xf32, #tpu.memory_space<vmem>>, %arg4: memref<32x8xf32, #tpu.memory_space<vmem>>, %arg5: memref<32x1xf32, #tpu.memory_space<vmem>>, %arg6: memref<4x32xf32, #tpu.memory_space<vmem>>, %arg7: memref<4x1xf32, #tpu.memory_space<vmem>>, %arg8: memref<4x32xf32, #tpu.memory_space<vmem>>, %arg9: memref<4x1xf32, #tpu.memory_space<vmem>>, %arg10: memref<4x1xf32, #tpu.memory_space<vmem>>, %arg11: memref<4x1xf32, #tpu.memory_space<vmem>>, %arg12: memref<4x1xf32, #tpu.memory_space<vmem>>, %arg13: memref<4x1xf32, #tpu.memory_space<vmem>>, %arg14: memref<32x8xf32, #tpu.memory_space<vmem>>, %arg15: memref<32x1xf32, #tpu.memory_space<vmem>>, %arg16: memref<4x32xf32, #tpu.memory_space<vmem>>, %arg17: memref<4x1xf32, #tpu.memory_space<vmem>>, %arg18: memref<4x32xf32, #tpu.memory_space<vmem>>, %arg19: memref<4x1xf32, #tpu.memory_space<vmem>>, %arg20: memref<4x1xf32, #tpu.memory_space<vmem>>, %arg21: memref<4x1xf32, #tpu.memory_space<vmem>>, %arg22: memref<4x1xf32, #tpu.memory_space<vmem>>, %arg23: memref<4x1xf32, #tpu.memory_space<vmem>>, %arg24: memref<8x8xf32, #tpu.memory_space<vmem>>, %arg25: memref<1x8xf32, #tpu.memory_space<vmem>>) attributes {dimension_semantics = [#tpu.dimension_semantics<parallel>], iteration_bounds = array<i64: 1>, scalar_prefetch = 0 : i64, scratch_operands = 0 : i64, tpu.core_type = #tpu.core_type<tc>, window_params = [{transform_indices = @transform_0, window_bounds = array<i64: 8, 8>}, {transform_indices = @transform_1, window_bounds = array<i64: 4, 8>}, {transform_indices = @transform_2, window_bounds = array<i64: 1, 8>}, {pipeline_mode = #tpu.pipeline_mode<synchronous>, transform_indices = @transform_3, window_bounds = array<i64: 32, 8>}, {pipeline_mode = #tpu.pipeline_mode<synchronous>, transform_indices = @transform_4, window_bounds = array<i64: 32, 1>}, {pipeline_mode = #tpu.pipeline_mode<synchronous>, transform_indices = @transform_5, window_bounds = array<i64: 4, 32>}, {pipeline_mode = #tpu.pipeline_mode<synchronous>, transform_indices = @transform_6, window_bounds = array<i64: 4, 1>}, {pipeline_mode = #tpu.pipeline_mode<synchronous>, transform_indices = @transform_7, window_bounds = array<i64: 4, 32>}, {pipeline_mode = #tpu.pipeline_mode<synchronous>, transform_indices = @transform_8, window_bounds = array<i64: 4, 1>}, {pipeline_mode = #tpu.pipeline_mode<synchronous>, transform_indices = @transform_9, window_bounds = array<i64: 4, 1>}, {pipeline_mode = #tpu.pipeline_mode<synchronous>, transform_indices = @transform_10, window_bounds = array<i64: 4, 1>}, {pipeline_mode = #tpu.pipeline_mode<synchronous>, transform_indices = @transform_11, window_bounds = array<i64: 4, 1>}, {pipeline_mode = #tpu.pipeline_mode<synchronous>, transform_indices = @transform_12, window_bounds = array<i64: 4, 1>}, {pipeline_mode = #tpu.pipeline_mode<synchronous>, transform_indices = @transform_13, window_bounds = array<i64: 32, 8>}, {pipeline_mode = #tpu.pipeline_mode<synchronous>, transform_indices = @transform_14, window_bounds = array<i64: 32, 1>}, {pipeline_mode = #tpu.pipeline_mode<synchronous>, transform_indices = @transform_15, window_bounds = array<i64: 4, 32>}, {pipeline_mode = #tpu.pipeline_mode<synchronous>, transform_indices = @transform_16, window_bounds = array<i64: 4, 1>}, {pipeline_mode = #tpu.pipeline_mode<synchronous>, transform_indices = @transform_17, window_bounds = array<i64: 4, 32>}, {pipeline_mode = #tpu.pipeline_mode<synchronous>, transform_indices = @transform_18, window_bounds = array<i64: 4, 1>}, {pipeline_mode = #tpu.pipeline_mode<synchronous>, transform_indices = @transform_19, window_bounds = array<i64: 4, 1>}, {pipeline_mode = #tpu.pipeline_mode<synchronous>, transform_indices = @transform_20, window_bounds = array<i64: 4, 1>}, {pipeline_mode = #tpu.pipeline_mode<synchronous>, transform_indices = @transform_21, window_bounds = array<i64: 4, 1>}, {pipeline_mode = #tpu.pipeline_mode<synchronous>, transform_indices = @transform_22, window_bounds = array<i64: 4, 1>}, {transform_indices = @transform_23, window_bounds = array<i64: 8, 8>}, {transform_indices = @transform_24, window_bounds = array<i64: 1, 8>}]} {
    %c0 = arith.constant 0 : index
    %c0_0 = arith.constant 0 : index
    %0 = vector.load %arg1[%c0, %c0_0] : memref<8x8xf32, #tpu.memory_space<vmem>>, vector<4x8xf32>
    %c4 = arith.constant 4 : index
    %c0_1 = arith.constant 0 : index
    %1 = vector.load %arg1[%c4, %c0_1] : memref<8x8xf32, #tpu.memory_space<vmem>>, vector<4x8xf32>
    %c0_2 = arith.constant 0 : index
    %c0_3 = arith.constant 0 : index
    %2 = vector.load %arg2[%c0_2, %c0_3] : memref<4x8xf32, #tpu.memory_space<vmem>>, vector<4x8xf32>
    %c0_4 = arith.constant 0 : index
    %c0_5 = arith.constant 0 : index
    %3 = vector.load %arg3[%c0_4, %c0_5] : memref<1x8xf32, #tpu.memory_space<vmem>>, vector<1x8xf32>
    %4 = tpu.concatenate %0, %2 in 0 : vector<4x8xf32>, vector<4x8xf32> -> vector<8x8xf32>
    %c0_6 = arith.constant 0 : index
    %c0_7 = arith.constant 0 : index
    %5 = vector.load %arg4[%c0_6, %c0_7] : memref<32x8xf32, #tpu.memory_space<vmem>>, vector<32x8xf32>
    %cst = arith.constant dense<0.000000e+00> : vector<32x8xf32>
    %6 = tpu.matmul %5, %4, %cst {dimension_numbers = #tpu.dot_dimension_numbers<[1], [0], [0], [1], [0, 0, 1, 1], [], []>} : vector<32x8xf32>, vector<8x8xf32>, vector<32x8xf32> -> vector<32x8xf32>
    %c0_8 = arith.constant 0 : index
    %c0_9 = arith.constant 0 : index
    %7 = vector.load %arg5[%c0_8, %c0_9] : memref<32x1xf32, #tpu.memory_space<vmem>>, vector<32x1xf32>
    %8 = vector.broadcast %7 : vector<32x1xf32> to vector<32x8xf32>
    %9 = arith.addf %6, %8 : vector<32x8xf32>
    %10 = math.tanh %9 : vector<32x8xf32>
    %c0_10 = arith.constant 0 : index
    %c0_11 = arith.constant 0 : index
    %11 = vector.load %arg6[%c0_10, %c0_11] : memref<4x32xf32, #tpu.memory_space<vmem>>, vector<4x32xf32>
    %cst_12 = arith.constant dense<0.000000e+00> : vector<4x8xf32>
    %12 = tpu.matmul %11, %10, %cst_12 {dimension_numbers = #tpu.dot_dimension_numbers<[1], [0], [0], [1], [0, 0, 1, 1], [], []>} : vector<4x32xf32>, vector<32x8xf32>, vector<4x8xf32> -> vector<4x8xf32>
    %c0_13 = arith.constant 0 : index
    %c0_14 = arith.constant 0 : index
    %13 = vector.load %arg7[%c0_13, %c0_14] : memref<4x1xf32, #tpu.memory_space<vmem>>, vector<4x1xf32>
    %14 = vector.broadcast %13 : vector<4x1xf32> to vector<4x8xf32>
    %15 = arith.addf %12, %14 : vector<4x8xf32>
    %16 = math.tanh %15 : vector<4x8xf32>
    %c0_15 = arith.constant 0 : index
    %c0_16 = arith.constant 0 : index
    %17 = vector.load %arg8[%c0_15, %c0_16] : memref<4x32xf32, #tpu.memory_space<vmem>>, vector<4x32xf32>
    %cst_17 = arith.constant dense<0.000000e+00> : vector<4x8xf32>
    %18 = tpu.matmul %17, %10, %cst_17 {dimension_numbers = #tpu.dot_dimension_numbers<[1], [0], [0], [1], [0, 0, 1, 1], [], []>} : vector<4x32xf32>, vector<32x8xf32>, vector<4x8xf32> -> vector<4x8xf32>
    %c0_18 = arith.constant 0 : index
    %c0_19 = arith.constant 0 : index
    %19 = vector.load %arg9[%c0_18, %c0_19] : memref<4x1xf32, #tpu.memory_space<vmem>>, vector<4x1xf32>
    %20 = vector.broadcast %19 : vector<4x1xf32> to vector<4x8xf32>
    %21 = arith.addf %18, %20 : vector<4x8xf32>
    %22 = math.exp %16 : vector<4x8xf32>
    %23 = arith.mulf %1, %22 : vector<4x8xf32>
    %24 = arith.addf %23, %21 : vector<4x8xf32>
    %cst_20 = arith.constant dense<0.000000e+00> : vector<8xf32>
    %25 = vector.multi_reduction <add>, %16, %cst_20 [0] : vector<4x8xf32> to vector<8xf32>
    %26 = vector.shape_cast %25 : vector<8xf32> to vector<1x8xf32>
    %27 = arith.addf %3, %26 : vector<1x8xf32>
    %c0_21 = arith.constant 0 : index
    %c0_22 = arith.constant 0 : index
    %28 = vector.load %arg10[%c0_21, %c0_22] : memref<4x1xf32, #tpu.memory_space<vmem>>, vector<4x1xf32>
    %29 = vector.broadcast %28 : vector<4x1xf32> to vector<4x8xf32>
    %30 = arith.mulf %0, %29 : vector<4x8xf32>
    %c0_23 = arith.constant 0 : index
    %c0_24 = arith.constant 0 : index
    %31 = vector.load %arg12[%c0_23, %c0_24] : memref<4x1xf32, #tpu.memory_space<vmem>>, vector<4x1xf32>
    %32 = vector.broadcast %31 : vector<4x1xf32> to vector<4x8xf32>
    %33 = arith.addf %30, %32 : vector<4x8xf32>
    %c0_25 = arith.constant 0 : index
    %c0_26 = arith.constant 0 : index
    %34 = vector.load %arg11[%c0_25, %c0_26] : memref<4x1xf32, #tpu.memory_space<vmem>>, vector<4x1xf32>
    %35 = vector.broadcast %34 : vector<4x1xf32> to vector<4x8xf32>
    %36 = arith.mulf %24, %35 : vector<4x8xf32>
    %c0_27 = arith.constant 0 : index
    %c0_28 = arith.constant 0 : index
    %37 = vector.load %arg13[%c0_27, %c0_28] : memref<4x1xf32, #tpu.memory_space<vmem>>, vector<4x1xf32>
    %38 = vector.broadcast %37 : vector<4x1xf32> to vector<4x8xf32>
    %39 = arith.addf %36, %38 : vector<4x8xf32>
    %40 = tpu.concatenate %39, %2 in 0 : vector<4x8xf32>, vector<4x8xf32> -> vector<8x8xf32>
    %c0_29 = arith.constant 0 : index
    %c0_30 = arith.constant 0 : index
    %41 = vector.load %arg14[%c0_29, %c0_30] : memref<32x8xf32, #tpu.memory_space<vmem>>, vector<32x8xf32>
    %cst_31 = arith.constant dense<0.000000e+00> : vector<32x8xf32>
    %42 = tpu.matmul %41, %40, %cst_31 {dimension_numbers = #tpu.dot_dimension_numbers<[1], [0], [0], [1], [0, 0, 1, 1], [], []>} : vector<32x8xf32>, vector<8x8xf32>, vector<32x8xf32> -> vector<32x8xf32>
    %c0_32 = arith.constant 0 : index
    %c0_33 = arith.constant 0 : index
    %43 = vector.load %arg15[%c0_32, %c0_33] : memref<32x1xf32, #tpu.memory_space<vmem>>, vector<32x1xf32>
    %44 = vector.broadcast %43 : vector<32x1xf32> to vector<32x8xf32>
    %45 = arith.addf %42, %44 : vector<32x8xf32>
    %46 = math.tanh %45 : vector<32x8xf32>
    %c0_34 = arith.constant 0 : index
    %c0_35 = arith.constant 0 : index
    %47 = vector.load %arg16[%c0_34, %c0_35] : memref<4x32xf32, #tpu.memory_space<vmem>>, vector<4x32xf32>
    %cst_36 = arith.constant dense<0.000000e+00> : vector<4x8xf32>
    %48 = tpu.matmul %47, %46, %cst_36 {dimension_numbers = #tpu.dot_dimension_numbers<[1], [0], [0], [1], [0, 0, 1, 1], [], []>} : vector<4x32xf32>, vector<32x8xf32>, vector<4x8xf32> -> vector<4x8xf32>
    %c0_37 = arith.constant 0 : index
    %c0_38 = arith.constant 0 : index
    %49 = vector.load %arg17[%c0_37, %c0_38] : memref<4x1xf32, #tpu.memory_space<vmem>>, vector<4x1xf32>
    %50 = vector.broadcast %49 : vector<4x1xf32> to vector<4x8xf32>
    %51 = arith.addf %48, %50 : vector<4x8xf32>
    %52 = math.tanh %51 : vector<4x8xf32>
    %c0_39 = arith.constant 0 : index
    %c0_40 = arith.constant 0 : index
    %53 = vector.load %arg18[%c0_39, %c0_40] : memref<4x32xf32, #tpu.memory_space<vmem>>, vector<4x32xf32>
    %cst_41 = arith.constant dense<0.000000e+00> : vector<4x8xf32>
    %54 = tpu.matmul %53, %46, %cst_41 {dimension_numbers = #tpu.dot_dimension_numbers<[1], [0], [0], [1], [0, 0, 1, 1], [], []>} : vector<4x32xf32>, vector<32x8xf32>, vector<4x8xf32> -> vector<4x8xf32>
    %c0_42 = arith.constant 0 : index
    %c0_43 = arith.constant 0 : index
    %55 = vector.load %arg19[%c0_42, %c0_43] : memref<4x1xf32, #tpu.memory_space<vmem>>, vector<4x1xf32>
    %56 = vector.broadcast %55 : vector<4x1xf32> to vector<4x8xf32>
    %57 = arith.addf %54, %56 : vector<4x8xf32>
    %58 = math.exp %52 : vector<4x8xf32>
    %59 = arith.mulf %33, %58 : vector<4x8xf32>
    %60 = arith.addf %59, %57 : vector<4x8xf32>
    %cst_44 = arith.constant dense<0.000000e+00> : vector<8xf32>
    %61 = vector.multi_reduction <add>, %52, %cst_44 [0] : vector<4x8xf32> to vector<8xf32>
    %62 = vector.shape_cast %61 : vector<8xf32> to vector<1x8xf32>
    %63 = arith.addf %27, %62 : vector<1x8xf32>
    %c0_45 = arith.constant 0 : index
    %c0_46 = arith.constant 0 : index
    %64 = vector.load %arg20[%c0_45, %c0_46] : memref<4x1xf32, #tpu.memory_space<vmem>>, vector<4x1xf32>
    %65 = vector.broadcast %64 : vector<4x1xf32> to vector<4x8xf32>
    %66 = arith.mulf %60, %65 : vector<4x8xf32>
    %c0_47 = arith.constant 0 : index
    %c0_48 = arith.constant 0 : index
    %67 = vector.load %arg22[%c0_47, %c0_48] : memref<4x1xf32, #tpu.memory_space<vmem>>, vector<4x1xf32>
    %68 = vector.broadcast %67 : vector<4x1xf32> to vector<4x8xf32>
    %69 = arith.addf %66, %68 : vector<4x8xf32>
    %c0_49 = arith.constant 0 : index
    %c0_50 = arith.constant 0 : index
    %70 = vector.load %arg21[%c0_49, %c0_50] : memref<4x1xf32, #tpu.memory_space<vmem>>, vector<4x1xf32>
    %71 = vector.broadcast %70 : vector<4x1xf32> to vector<4x8xf32>
    %72 = arith.mulf %39, %71 : vector<4x8xf32>
    %c0_51 = arith.constant 0 : index
    %c0_52 = arith.constant 0 : index
    %73 = vector.load %arg23[%c0_51, %c0_52] : memref<4x1xf32, #tpu.memory_space<vmem>>, vector<4x1xf32>
    %74 = vector.broadcast %73 : vector<4x1xf32> to vector<4x8xf32>
    %75 = arith.addf %72, %74 : vector<4x8xf32>
    %cst_53 = arith.constant -1.04127908 : f32
    %76 = vector.broadcast %cst_53 : f32 to vector<1x8xf32>
    %77 = arith.addf %63, %76 : vector<1x8xf32>
    %c0_54 = arith.constant 0 : index
    %c0_55 = arith.constant 0 : index
    %78 = vector.load %arg24[%c0_54, %c0_55] : memref<8x8xf32, #tpu.memory_space<vmem>>, vector<4x8xf32>
    tpu.vector_store %arg24[%c0_54, %c0_55], %69 {strides = array<i32>} : memref<8x8xf32, #tpu.memory_space<vmem>>, vector<4x8xf32>,
    %c4_56 = arith.constant 4 : index
    %c0_57 = arith.constant 0 : index
    %79 = vector.load %arg24[%c4_56, %c0_57] : memref<8x8xf32, #tpu.memory_space<vmem>>, vector<4x8xf32>
    tpu.vector_store %arg24[%c4_56, %c0_57], %75 {strides = array<i32>} : memref<8x8xf32, #tpu.memory_space<vmem>>, vector<4x8xf32>,
    %c0_58 = arith.constant 0 : index
    %c0_59 = arith.constant 0 : index
    %80 = vector.load %arg25[%c0_58, %c0_59] : memref<1x8xf32, #tpu.memory_space<vmem>>, vector<1x8xf32>
    tpu.vector_store %arg25[%c0_58, %c0_59], %77 {strides = array<i32>} : memref<1x8xf32, #tpu.memory_space<vmem>>, vector<1x8xf32>,
    return
  }
  func.func @transform_0(%arg0: i32) -> (i32, i32) {
    %c0_i32 = arith.constant 0 : i32
    %c0_i32_0 = arith.constant 0 : i32
    return %c0_i32, %arg0 : i32, i32
  }
  func.func @transform_1(%arg0: i32) -> (i32, i32) {
    %c0_i32 = arith.constant 0 : i32
    %c0_i32_0 = arith.constant 0 : i32
    return %c0_i32, %arg0 : i32, i32
  }
  func.func @transform_2(%arg0: i32) -> (i32, i32) {
    %c0_i32 = arith.constant 0 : i32
    %c0_i32_0 = arith.constant 0 : i32
    return %c0_i32, %arg0 : i32, i32
  }
  func.func @transform_3(%arg0: i32) -> (i32, i32) {
    %c0_i32 = arith.constant 0 : i32
    %c0_i32_0 = arith.constant 0 : i32
    %c0_i32_1 = arith.constant 0 : i32
    return %c0_i32, %c0_i32_0 : i32, i32
  }
  func.func @transform_4(%arg0: i32) -> (i32, i32) {
    %c0_i32 = arith.constant 0 : i32
    %c0_i32_0 = arith.constant 0 : i32
    %c0_i32_1 = arith.constant 0 : i32
    return %c0_i32, %c0_i32_0 : i32, i32
  }
  func.func @transform_5(%arg0: i32) -> (i32, i32) {
    %c0_i32 = arith.constant 0 : i32
    %c0_i32_0 = arith.constant 0 : i32
    %c0_i32_1 = arith.constant 0 : i32
    return %c0_i32, %c0_i32_0 : i32, i32
  }
  func.func @transform_6(%arg0: i32) -> (i32, i32) {
    %c0_i32 = arith.constant 0 : i32
    %c0_i32_0 = arith.constant 0 : i32
    %c0_i32_1 = arith.constant 0 : i32
    return %c0_i32, %c0_i32_0 : i32, i32
  }
  func.func @transform_7(%arg0: i32) -> (i32, i32) {
    %c0_i32 = arith.constant 0 : i32
    %c0_i32_0 = arith.constant 0 : i32
    %c0_i32_1 = arith.constant 0 : i32
    return %c0_i32, %c0_i32_0 : i32, i32
  }
  func.func @transform_8(%arg0: i32) -> (i32, i32) {
    %c0_i32 = arith.constant 0 : i32
    %c0_i32_0 = arith.constant 0 : i32
    %c0_i32_1 = arith.constant 0 : i32
    return %c0_i32, %c0_i32_0 : i32, i32
  }
  func.func @transform_9(%arg0: i32) -> (i32, i32) {
    %c0_i32 = arith.constant 0 : i32
    %c0_i32_0 = arith.constant 0 : i32
    %c0_i32_1 = arith.constant 0 : i32
    return %c0_i32, %c0_i32_0 : i32, i32
  }
  func.func @transform_10(%arg0: i32) -> (i32, i32) {
    %c0_i32 = arith.constant 0 : i32
    %c0_i32_0 = arith.constant 0 : i32
    %c0_i32_1 = arith.constant 0 : i32
    return %c0_i32, %c0_i32_0 : i32, i32
  }
  func.func @transform_11(%arg0: i32) -> (i32, i32) {
    %c0_i32 = arith.constant 0 : i32
    %c0_i32_0 = arith.constant 0 : i32
    %c0_i32_1 = arith.constant 0 : i32
    return %c0_i32, %c0_i32_0 : i32, i32
  }
  func.func @transform_12(%arg0: i32) -> (i32, i32) {
    %c0_i32 = arith.constant 0 : i32
    %c0_i32_0 = arith.constant 0 : i32
    %c0_i32_1 = arith.constant 0 : i32
    return %c0_i32, %c0_i32_0 : i32, i32
  }
  func.func @transform_13(%arg0: i32) -> (i32, i32) {
    %c0_i32 = arith.constant 0 : i32
    %c0_i32_0 = arith.constant 0 : i32
    %c0_i32_1 = arith.constant 0 : i32
    return %c0_i32, %c0_i32_0 : i32, i32
  }
  func.func @transform_14(%arg0: i32) -> (i32, i32) {
    %c0_i32 = arith.constant 0 : i32
    %c0_i32_0 = arith.constant 0 : i32
    %c0_i32_1 = arith.constant 0 : i32
    return %c0_i32, %c0_i32_0 : i32, i32
  }
  func.func @transform_15(%arg0: i32) -> (i32, i32) {
    %c0_i32 = arith.constant 0 : i32
    %c0_i32_0 = arith.constant 0 : i32
    %c0_i32_1 = arith.constant 0 : i32
    return %c0_i32, %c0_i32_0 : i32, i32
  }
  func.func @transform_16(%arg0: i32) -> (i32, i32) {
    %c0_i32 = arith.constant 0 : i32
    %c0_i32_0 = arith.constant 0 : i32
    %c0_i32_1 = arith.constant 0 : i32
    return %c0_i32, %c0_i32_0 : i32, i32
  }
  func.func @transform_17(%arg0: i32) -> (i32, i32) {
    %c0_i32 = arith.constant 0 : i32
    %c0_i32_0 = arith.constant 0 : i32
    %c0_i32_1 = arith.constant 0 : i32
    return %c0_i32, %c0_i32_0 : i32, i32
  }
  func.func @transform_18(%arg0: i32) -> (i32, i32) {
    %c0_i32 = arith.constant 0 : i32
    %c0_i32_0 = arith.constant 0 : i32
    %c0_i32_1 = arith.constant 0 : i32
    return %c0_i32, %c0_i32_0 : i32, i32
  }
  func.func @transform_19(%arg0: i32) -> (i32, i32) {
    %c0_i32 = arith.constant 0 : i32
    %c0_i32_0 = arith.constant 0 : i32
    %c0_i32_1 = arith.constant 0 : i32
    return %c0_i32, %c0_i32_0 : i32, i32
  }
  func.func @transform_20(%arg0: i32) -> (i32, i32) {
    %c0_i32 = arith.constant 0 : i32
    %c0_i32_0 = arith.constant 0 : i32
    %c0_i32_1 = arith.constant 0 : i32
    return %c0_i32, %c0_i32_0 : i32, i32
  }
  func.func @transform_21(%arg0: i32) -> (i32, i32) {
    %c0_i32 = arith.constant 0 : i32
    %c0_i32_0 = arith.constant 0 : i32
    %c0_i32_1 = arith.constant 0 : i32
    return %c0_i32, %c0_i32_0 : i32, i32
  }
  func.func @transform_22(%arg0: i32) -> (i32, i32) {
    %c0_i32 = arith.constant 0 : i32
    %c0_i32_0 = arith.constant 0 : i32
    %c0_i32_1 = arith.constant 0 : i32
    return %c0_i32, %c0_i32_0 : i32, i32
  }
  func.func @transform_23(%arg0: i32) -> (i32, i32) {
    %c0_i32 = arith.constant 0 : i32
    %c0_i32_0 = arith.constant 0 : i32
    return %c0_i32, %arg0 : i32, i32
  }
  func.func @transform_24(%arg0: i32) -> (i32, i32) {
    %c0_i32 = arith.constant 0 : i32
    %c0_i32_0 = arith.constant 0 : i32
    return %c0_i32, %arg0 : i32, i32
  }
}

</mosaic_0001>

<llo_original>
// kernel: tpu_custom_call.1
$region0: #{tpu_custom_call.1}
  #allocation0 [shape = 'u32[]', space=smem, size = 0x4, offset = 0x4, fixed_abs, tag = 'smem constant byte address 0x4 - core index']
  #allocation1 [shape = 'u32[144,128]{1,0:T(1,128)}', space=vmem, size = 0x12000, scoped, tag = 'internal scratch']
  %s0 = inlined_call_operand.vmem [shape: f32[8,8], index: 0, kind: input, shape index: {}]
  %s1 = inlined_call_operand.vmem [shape: f32[4,8], index: 1, kind: input, shape index: {}]
  %s2 = inlined_call_operand.vmem [shape: f32[1,8], index: 2, kind: input, shape index: {}]
  %s3 = inlined_call_operand.vmem [shape: f32[32,8], index: 3, kind: input, shape index: {}]
  %s4 = inlined_call_operand.vmem [shape: f32[32,1], index: 4, kind: input, shape index: {}]
  %s5 = inlined_call_operand.vmem [shape: f32[4,32], index: 5, kind: input, shape index: {}]
  %s6 = inlined_call_operand.vmem [shape: f32[4,1], index: 6, kind: input, shape index: {}]
  %s7 = inlined_call_operand.vmem [shape: f32[4,32], index: 7, kind: input, shape index: {}]
  %s8 = inlined_call_operand.vmem [shape: f32[4,1], index: 8, kind: input, shape index: {}]
  %s9 = inlined_call_operand.vmem [shape: f32[4,1], index: 9, kind: input, shape index: {}]
  %s10 = inlined_call_operand.vmem [shape: f32[4,1], index: 10, kind: input, shape index: {}]
  %s11 = inlined_call_operand.vmem [shape: f32[4,1], index: 11, kind: input, shape index: {}]
  %s12 = inlined_call_operand.vmem [shape: f32[4,1], index: 12, kind: input, shape index: {}]
  %s13 = inlined_call_operand.vmem [shape: f32[32,8], index: 13, kind: input, shape index: {}]
  %s14 = inlined_call_operand.vmem [shape: f32[32,1], index: 14, kind: input, shape index: {}]
  %s15 = inlined_call_operand.vmem [shape: f32[4,32], index: 15, kind: input, shape index: {}]
  %s16 = inlined_call_operand.vmem [shape: f32[4,1], index: 16, kind: input, shape index: {}]
  %s17 = inlined_call_operand.vmem [shape: f32[4,32], index: 17, kind: input, shape index: {}]
  %s18 = inlined_call_operand.vmem [shape: f32[4,1], index: 18, kind: input, shape index: {}]
  %s19 = inlined_call_operand.vmem [shape: f32[4,1], index: 19, kind: input, shape index: {}]
  %s20 = inlined_call_operand.vmem [shape: f32[4,1], index: 20, kind: input, shape index: {}]
  %s21 = inlined_call_operand.vmem [shape: f32[4,1], index: 21, kind: input, shape index: {}]
  %s22 = inlined_call_operand.vmem [shape: f32[4,1], index: 22, kind: input, shape index: {}]
  %s23 = inlined_call_operand.hbm [shape: f32[8,8], index: 23, kind: output, shape index: {0}]
  %s24 = inlined_call_operand.hbm [shape: f32[1,8], index: 24, kind: output, shape index: {1}]
  %25 = xla_tuple %s23, %s24
  %s26 = sld [smem:[#allocation0]]
  $region110: #{tpu_custom_call.1} parent=0
    _
  %s28 = ssub.s32 1, %s26
  %s29 = scalar_select 0, %s28, %s26
  $region1: #{tpu_custom_call.1} parent=0
    #allocation2 [shape = 'u8[4096]{0}', space=vmem, size = 0x1000, scoped, tag = 'output window, operand 0, single buffered']
    #allocation3 [shape = 's32[1]{0}', space=sflag, size = 0x4, scoped, tag = 'scoped memory for tpu_custom_call.1']
    #allocation4 [shape = 'u8[512]{0}', space=vmem, size = 0x400, scoped, tag = 'output window, operand 1, single buffered']
    #allocation5 [shape = 's32[1]{0}', space=sflag, size = 0x4, scoped, tag = 'scoped memory for tpu_custom_call.1']
    %30 = vsyncpa [#allocation3], 0
    %31 = vsyncpa [#allocation5], 0
    // Predicated region
    $region2: #{tpu_custom_call.1} parent=1 // pred_check
      _
    $region3: #{tpu_custom_call.1} parent=1 // pred_check_branch
      %33 = sbr.rel (0) target = $region5
    $region4: #{tpu_custom_call.1} parent=1 // pred_region
      _
    $region5: #{tpu_custom_call.1} parent=1 // pred_fallthru
      _
    // Predicated region
    $region6: #{tpu_custom_call.1} parent=1 // pred_check
      _
    $region7: #{tpu_custom_call.1} parent=1 // pred_check_branch
      %35 = sbr.rel (0) target = $region9
    $region8: #{tpu_custom_call.1} parent=1 // pred_region
      _
    $region9: #{tpu_custom_call.1} parent=1 // pred_fallthru
      _
    // Predicated region
    $region10: #{tpu_custom_call.1} parent=1 // pred_check
      _
    $region11: #{tpu_custom_call.1} parent=1 // pred_check_branch
      %37 = sbr.rel (0) target = $region13
    $region12: #{tpu_custom_call.1} parent=1 // pred_region
      _
    $region13: #{tpu_custom_call.1} parent=1 // pred_fallthru
      _
    // Predicated region
    $region14: #{tpu_custom_call.1} parent=1 // pred_check
      _
    $region15: #{tpu_custom_call.1} parent=1 // pred_check_branch
      %39 = sbr.rel (0) target = $region17
    $region16: #{tpu_custom_call.1} parent=1 // pred_region
      _
    $region17: #{tpu_custom_call.1} parent=1 // pred_fallthru
      _
    // Predicated region
    $region18: #{tpu_custom_call.1} parent=1 // pred_check
      _
    $region19: #{tpu_custom_call.1} parent=1 // pred_check_branch
      %41 = sbr.rel (0) target = $region21
    $region20: #{tpu_custom_call.1} parent=1 // pred_region
      _
    $region21: #{tpu_custom_call.1} parent=1 // pred_fallthru
      _
    // Predicated region
    $region22: #{tpu_custom_call.1} parent=1 // pred_check
      _
    $region23: #{tpu_custom_call.1} parent=1 // pred_check_branch
      %43 = sbr.rel (0) target = $region25
    $region24: #{tpu_custom_call.1} parent=1 // pred_region
      _
    $region25: #{tpu_custom_call.1} parent=1 // pred_fallthru
      _
    // Predicated region
    $region26: #{tpu_custom_call.1} parent=1 // pred_check
      _
    $region27: #{tpu_custom_call.1} parent=1 // pred_check_branch
      %45 = sbr.rel (0) target = $region29
    $region28: #{tpu_custom_call.1} parent=1 // pred_region
      _
    $region29: #{tpu_custom_call.1} parent=1 // pred_fallthru
      _
    // Predicated region
    $region30: #{tpu_custom_call.1} parent=1 // pred_check
      _
    $region31: #{tpu_custom_call.1} parent=1 // pred_check_branch
      %47 = sbr.rel (0) target = $region33
    $region32: #{tpu_custom_call.1} parent=1 // pred_region
      _
    $region33: #{tpu_custom_call.1} parent=1 // pred_fallthru
      _
    // Predicated region
    $region34: #{tpu_custom_call.1} parent=1 // pred_check
      _
    $region35: #{tpu_custom_call.1} parent=1 // pred_check_branch
      %49 = sbr.rel (0) target = $region37
    $region36: #{tpu_custom_call.1} parent=1 // pred_region
      _
    $region37: #{tpu_custom_call.1} parent=1 // pred_fallthru
      _
    // Predicated region
    $region38: #{tpu_custom_call.1} parent=1 // pred_check
      _
    $region39: #{tpu_custom_call.1} parent=1 // pred_check_branch
      %51 = sbr.rel (0) target = $region41
    $region40: #{tpu_custom_call.1} parent=1 // pred_region
      _
    $region41: #{tpu_custom_call.1} parent=1 // pred_fallthru
      _
    // Predicated region
    $region42: #{tpu_custom_call.1} parent=1 // pred_check
      _
    $region43: #{tpu_custom_call.1} parent=1 // pred_check_branch
      %53 = sbr.rel (0) target = $region45
    $region44: #{tpu_custom_call.1} parent=1 // pred_region
      _
    $region45: #{tpu_custom_call.1} parent=1 // pred_fallthru
      _
    // Predicated region
    $region46: #{tpu_custom_call.1} parent=1 // pred_check
      _
    $region47: #{tpu_custom_call.1} parent=1 // pred_check_branch
      %55 = sbr.rel (0) target = $region49
    $region48: #{tpu_custom_call.1} parent=1 // pred_region
      _
    $region49: #{tpu_custom_call.1} parent=1 // pred_fallthru
      _
    // Predicated region
    $region50: #{tpu_custom_call.1} parent=1 // pred_check
      _
    $region51: #{tpu_custom_call.1} parent=1 // pred_check_branch
      %57 = sbr.rel (0) target = $region53
    $region52: #{tpu_custom_call.1} parent=1 // pred_region
      _
    $region53: #{tpu_custom_call.1} parent=1 // pred_fallthru
      _
    // Predicated region
    $region54: #{tpu_custom_call.1} parent=1 // pred_check
      _
    $region55: #{tpu_custom_call.1} parent=1 // pred_check_branch
      %59 = sbr.rel (0) target = $region57
    $region56: #{tpu_custom_call.1} parent=1 // pred_region
      _
    $region57: #{tpu_custom_call.1} parent=1 // pred_fallthru
      _
    // Predicated region
    $region58: #{tpu_custom_call.1} parent=1 // pred_check
      _
    $region59: #{tpu_custom_call.1} parent=1 // pred_check_branch
      %61 = sbr.rel (0) target = $region61
    $region60: #{tpu_custom_call.1} parent=1 // pred_region
      _
    $region61: #{tpu_custom_call.1} parent=1 // pred_fallthru
      _
    // Predicated region
    $region62: #{tpu_custom_call.1} parent=1 // pred_check
      _
    $region63: #{tpu_custom_call.1} parent=1 // pred_check_branch
      %63 = sbr.rel (0) target = $region65
    $region64: #{tpu_custom_call.1} parent=1 // pred_region
      _
    $region65: #{tpu_custom_call.1} parent=1 // pred_fallthru
      _
    // Predicated region
    $region66: #{tpu_custom_call.1} parent=1 // pred_check
      _
    $region67: #{tpu_custom_call.1} parent=1 // pred_check_branch
      %65 = sbr.rel (0) target = $region69
    $region68: #{tpu_custom_call.1} parent=1 // pred_region
      _
    $region69: #{tpu_custom_call.1} parent=1 // pred_fallthru
      _
    // Predicated region
    $region70: #{tpu_custom_call.1} parent=1 // pred_check
      _
    $region71: #{tpu_custom_call.1} parent=1 // pred_check_branch
      %67 = sbr.rel (0) target = $region73
    $region72: #{tpu_custom_call.1} parent=1 // pred_region
      _
    $region73: #{tpu_custom_call.1} parent=1 // pred_fallthru
      _
    // Predicated region
    $region74: #{tpu_custom_call.1} parent=1 // pred_check
      _
    $region75: #{tpu_custom_call.1} parent=1 // pred_check_branch
      %69 = sbr.rel (0) target = $region77
    $region76: #{tpu_custom_call.1} parent=1 // pred_region
      _
    $region77: #{tpu_custom_call.1} parent=1 // pred_fallthru
      _
    // Predicated region
    $region78: #{tpu_custom_call.1} parent=1 // pred_check
      _
    $region79: #{tpu_custom_call.1} parent=1 // pred_check_branch
      %71 = sbr.rel (0) target = $region81
    $region80: #{tpu_custom_call.1} parent=1 // pred_region
      _
    $region81: #{tpu_custom_call.1} parent=1 // pred_fallthru
      _
    // Predicated region
    $region82: #{tpu_custom_call.1} parent=1 // pred_check
      _
    $region83: #{tpu_custom_call.1} parent=1 // pred_check_branch
      %73 = sbr.rel (0) target = $region85
    $region84: #{tpu_custom_call.1} parent=1 // pred_region
      _
    $region85: #{tpu_custom_call.1} parent=1 // pred_fallthru
      _
    // Predicated region
    $region86: #{tpu_custom_call.1} parent=1 // pred_check
      _
    $region87: #{tpu_custom_call.1} parent=1 // pred_check_branch
      %75 = sbr.rel (0) target = $region89
    $region88: #{tpu_custom_call.1} parent=1 // pred_region
      _
    $region89: #{tpu_custom_call.1} parent=1 // pred_fallthru
      _
    // Predicated region
    $region90: #{tpu_custom_call.1} parent=1 // pred_check
      _
    $region91: #{tpu_custom_call.1} parent=1 // pred_check_branch
      %77 = sbr.rel (0) target = $region93
    $region92: #{tpu_custom_call.1} parent=1 // pred_region
      _
    $region93: #{tpu_custom_call.1} parent=1 // pred_fallthru
      _
    %v78 = vld [vmem:[%s0] sm:$0xf]
    %v79 = vld [vmem:[%s0 + $0x4] sm:$0xf]
    %v80 = vld [vmem:[%s1] sm:$0xf]
    %v81 = vld [vmem:[%s2] sm:$0x1]
    %v83 = vrot.slane %v80, 4
    %vm85 = vcmask 1043456
    %v86 = vsel %vm85, %v78, %v83
    %v87 = vld [vmem:[%s3] sm:$0xff]
    %v88 = vld [vmem:[%s3 + $0x8] sm:$0xff]
    %v89 = vld [vmem:[%s3 + $0x10] sm:$0xff]
    %v90 = vld [vmem:[%s3 + $0x18] sm:$0xff]
    %v91 = vld [vmem:[%s4] sm:$0xff]
    %v92 = vld [vmem:[%s4 + $0x8] sm:$0xff]
    %v93 = vld [vmem:[%s4 + $0x10] sm:$0xff]
    %v94 = vld [vmem:[%s4 + $0x18] sm:$0xff]
    %96 = vset.pattern.permute.xlu0 0
    %97 = vperm.xlu0 %96, %v91
    %v98 = vpop.permute.xlu0 %97
    %101 = vset.pattern.permute.xlu0 0
    %102 = vperm.xlu0 %101, %v92
    %v103 = vpop.permute.xlu0 %102
    %106 = vset.pattern.permute.xlu0 0
    %107 = vperm.xlu0 %106, %v93
    %v108 = vpop.permute.xlu0 %107
    %111 = vset.pattern.permute.xlu0 0
    %112 = vperm.xlu0 %111, %v94
    %v113 = vpop.permute.xlu0 %112
    %vm115 = vcmask 64512
    %v117 = vsel %vm115, %v87, 0
    %v120 = vsel %vm115, %v88, 0
    %v123 = vsel %vm115, %v89, 0
    %v126 = vsel %vm115, %v90, 0
    %128 = vmatprep.subr.mxu0 0.0
    %129 = vmatpush1.msra.mxu0 %v86
    %130 = vmatprep.subr.mxu0 0.0
    %131 = vmatpush1.msra.mxu0 0.0
    %132 = vmatprep.subr.mxu0 0.0
    %133 = vmatpush1.msra.mxu0 0.0
    %134 = vmatprep.subr.mxu0 0.0
    %135 = vmatpush1.msra.mxu0 0.0
    %136 = vmatprep.subr.mxu0 0.0
    %137 = vmatpush1.msra.mxu0 0.0
    %138 = vmatprep.subr.mxu0 0.0
    %139 = vmatpush1.msra.mxu0 0.0
    %140 = vmatprep.subr.mxu0 0.0
    %141 = vmatpush1.msra.mxu0 0.0
    %142 = vmatprep.subr.mxu0 0.0
    %143 = vmatpush1.msra.mxu0 0.0
    %144 = vmatprep.subr.mxu0 0.0
    %145 = vmatpush1.msra.mxu0 0.0
    %146 = vmatprep.subr.mxu0 0.0
    %147 = vmatpush1.msra.mxu0 0.0
    %148 = vmatprep.subr.mxu0 0.0
    %149 = vmatpush1.msra.mxu0 0.0
    %150 = vmatprep.subr.mxu0 0.0
    %151 = vmatpush1.msra.mxu0 0.0
    %152 = vmatprep.subr.mxu0 0.0
    %153 = vmatpush1.msra.mxu0 0.0
    %154 = vmatprep.subr.mxu0 0.0
    %155 = vmatpush1.msra.mxu0 0.0
    %156 = vmatprep.subr.mxu0 0.0
    %157 = vmatpush1.msra.mxu0 0.0
    %158 = vmatprep.subr.mxu0 0.0
    %159 = vmatpush1.msra.mxu0 0.0
    %160 = vmatprep.subr.mxu0 0.0
    %161 = vmatpush1.msra.mxu0 0.0
    %162 = vmatprep.subr.mxu0 0.0
    %163 = vmatpush1.msra.mxu0 0.0
    %164 = vmatprep.subr.mxu0 0.0
    %165 = vmatpush1.msra.mxu0 0.0
    %166 = vmatprep.subr.mxu0 0.0
    %167 = vmatpush1.msra.mxu0 0.0
    %168 = vmatprep.subr.mxu0 0.0
    %169 = vmatpush1.msra.mxu0 0.0
    %170 = vmatprep.subr.mxu0 0.0
    %171 = vmatpush1.msra.mxu0 0.0
    %172 = vmatprep.subr.mxu0 0.0
    %173 = vmatpush1.msra.mxu0 0.0
    %174 = vmatprep.subr.mxu0 0.0
    %175 = vmatpush1.msra.mxu0 0.0
    %176 = vmatprep.subr.mxu0 0.0
    %177 = vmatpush1.msra.mxu0 0.0
    %178 = vmatprep.subr.mxu0 0.0
    %179 = vmatpush1.msra.mxu0 0.0
    %180 = vmatprep.subr.mxu0 0.0
    %181 = vmatpush1.msra.mxu0 0.0
    %182 = vmatprep.subr.mxu0 0.0
    %183 = vmatpush1.msra.mxu0 0.0
    %184 = vmatprep.subr.mxu0 0.0
    %185 = vmatpush1.msra.mxu0 0.0
    %186 = vmatprep.subr.mxu0 0.0
    %187 = vmatpush1.msra.mxu0 0.0
    %188 = vmatprep.subr.mxu0 0.0
    %189 = vmatpush1.msra.mxu0 0.0
    %190 = vmatprep.subr.mxu0 0.0
    %191 = vmatpush1.msra.mxu0 0.0
    %192 = vmatprep.mubr.f32.mxu0 0.0
    %193 = vmatmul.mubr.f32.gmra.mrb[0].mxu0 %v117
    %v194 = vpop.f32.mrb[0].mxu0
    %v195 = vadd.f32 %v98, %v194
    %v196 = vpop.f32.mrb[0].mxu0
    %197 = vmatprep.mubr.f32.mxu0 0.0
    %198 = vmatmul.mubr.f32.gmra.mrb[0].mxu0 %v120
    %v199 = vpop.f32.mrb[0].mxu0
    %v200 = vadd.f32 %v103, %v199
    %v201 = vpop.f32.mrb[0].mxu0
    %202 = vmatprep.mubr.f32.mxu0 0.0
    %203 = vmatmul.mubr.f32.gmra.mrb[0].mxu0 %v123
    %v204 = vpop.f32.mrb[0].mxu0
    %v205 = vadd.f32 %v108, %v204
    %v206 = vpop.f32.mrb[0].mxu0
    %207 = vmatprep.mubr.f32.mxu0 0.0
    %208 = vmatmul.mubr.f32.gmra.mrb[0].mxu0 %v126
    %v209 = vpop.f32.mrb[0].mxu0
    %v210 = vadd.f32 %v113, %v209
    %v211 = vpop.f32.mrb[0].mxu0
    %212 = vdwg.mxu0
    %v213 = vtanh.pop %v195
    %v214 = vtanh.pop %v200
    %v215 = vtanh.pop %v205
    %v216 = vtanh.pop %v210
    %v217 = vld [vmem:[%s5] sm:$0xf]
    %v218 = vld [vmem:[%s6] sm:$0xf]
    %220 = vset.pattern.permute.xlu0 0
    %221 = vperm.xlu0 %220, %v218
    %v222 = vpop.permute.xlu0 %221
    %vm224 = vcmask 261120
    %v226 = vsel %vm224, %v217, 0
    %228 = vmatprep.subr.mxu0 0.0
    %229 = vmatpush1.msra.mxu0 %v213
    %230 = vmatprep.subr.mxu0 0.0
    %231 = vmatpush1.msra.mxu0 %v214
    %232 = vmatprep.subr.mxu0 0.0
    %233 = vmatpush1.msra.mxu0 %v215
    %234 = vmatprep.subr.mxu0 0.0
    %235 = vmatpush1.msra.mxu0 %v216
    %236 = vmatprep.subr.mxu0 0.0
    %237 = vmatpush1.msra.mxu0 0.0
    %238 = vmatprep.subr.mxu0 0.0
    %239 = vmatpush1.msra.mxu0 0.0
    %240 = vmatprep.subr.mxu0 0.0
    %241 = vmatpush1.msra.mxu0 0.0
    %242 = vmatprep.subr.mxu0 0.0
    %243 = vmatpush1.msra.mxu0 0.0
    %244 = vmatprep.subr.mxu0 0.0
    %245 = vmatpush1.msra.mxu0 0.0
    %246 = vmatprep.subr.mxu0 0.0
    %247 = vmatpush1.msra.mxu0 0.0
    %248 = vmatprep.subr.mxu0 0.0
    %249 = vmatpush1.msra.mxu0 0.0
    %250 = vmatprep.subr.mxu0 0.0
    %251 = vmatpush1.msra.mxu0 0.0
    %252 = vmatprep.subr.mxu0 0.0
    %253 = vmatpush1.msra.mxu0 0.0
    %254 = vmatprep.subr.mxu0 0.0
    %255 = vmatpush1.msra.mxu0 0.0
    %256 = vmatprep.subr.mxu0 0.0
    %257 = vmatpush1.msra.mxu0 0.0
    %258 = vmatprep.subr.mxu0 0.0
    %259 = vmatpush1.msra.mxu0 0.0
    %260 = vmatprep.subr.mxu0 0.0
    %261 = vmatpush1.msra.mxu0 0.0
    %262 = vmatprep.subr.mxu0 0.0
    %263 = vmatpush1.msra.mxu0 0.0
    %264 = vmatprep.subr.mxu0 0.0
    %265 = vmatpush1.msra.mxu0 0.0
    %266 = vmatprep.subr.mxu0 0.0
    %267 = vmatpush1.msra.mxu0 0.0
    %268 = vmatprep.subr.mxu0 0.0
    %269 = vmatpush1.msra.mxu0 0.0
    %270 = vmatprep.subr.mxu0 0.0
    %271 = vmatpush1.msra.mxu0 0.0
    %272 = vmatprep.subr.mxu0 0.0
    %273 = vmatpush1.msra.mxu0 0.0
    %274 = vmatprep.subr.mxu0 0.0
    %275 = vmatpush1.msra.mxu0 0.0
    %276 = vmatprep.subr.mxu0 0.0
    %277 = vmatpush1.msra.mxu0 0.0
    %278 = vmatprep.subr.mxu0 0.0
    %279 = vmatpush1.msra.mxu0 0.0
    %280 = vmatprep.subr.mxu0 0.0
    %281 = vmatpush1.msra.mxu0 0.0
    %282 = vmatprep.subr.mxu0 0.0
    %283 = vmatpush1.msra.mxu0 0.0
    %284 = vmatprep.subr.mxu0 0.0
    %285 = vmatpush1.msra.mxu0 0.0
    %286 = vmatprep.subr.mxu0 0.0
    %287 = vmatpush1.msra.mxu0 0.0
    %288 = vmatprep.subr.mxu0 0.0
    %289 = vmatpush1.msra.mxu0 0.0
    %290 = vmatprep.subr.mxu0 0.0
    %291 = vmatpush1.msra.mxu0 0.0
    %292 = vmatprep.mubr.f32.mxu0 0.0
    %293 = vmatmul.mubr.f32.gmra.mrb[0].mxu0 %v226
    %v294 = vpop.f32.mrb[0].mxu0
    %v295 = vadd.f32 %v222, %v294
    %v296 = vpop.f32.mrb[0].mxu0
    %297 = vdwg.mxu0
    %v298 = vtanh.pop %v295
    %v299 = vld [vmem:[%s7] sm:$0xf]
    %v300 = vld [vmem:[%s8] sm:$0xf]
    %302 = vset.pattern.permute.xlu0 0
    %303 = vperm.xlu0 %302, %v300
    %v304 = vpop.permute.xlu0 %303
    %v307 = vsel %vm224, %v299, 0
    %309 = vmatprep.subr.mxu0 0.0
    %310 = vmatpush1.msra.mxu0 %v213
    %311 = vmatprep.subr.mxu0 0.0
    %312 = vmatpush1.msra.mxu0 %v214
    %313 = vmatprep.subr.mxu0 0.0
    %314 = vmatpush1.msra.mxu0 %v215
    %315 = vmatprep.subr.mxu0 0.0
    %316 = vmatpush1.msra.mxu0 %v216
    %317 = vmatprep.subr.mxu0 0.0
    %318 = vmatpush1.msra.mxu0 0.0
    %319 = vmatprep.subr.mxu0 0.0
    %320 = vmatpush1.msra.mxu0 0.0
    %321 = vmatprep.subr.mxu0 0.0
    %322 = vmatpush1.msra.mxu0 0.0
    %323 = vmatprep.subr.mxu0 0.0
    %324 = vmatpush1.msra.mxu0 0.0
    %325 = vmatprep.subr.mxu0 0.0
    %326 = vmatpush1.msra.mxu0 0.0
    %327 = vmatprep.subr.mxu0 0.0
    %328 = vmatpush1.msra.mxu0 0.0
    %329 = vmatprep.subr.mxu0 0.0
    %330 = vmatpush1.msra.mxu0 0.0
    %331 = vmatprep.subr.mxu0 0.0
    %332 = vmatpush1.msra.mxu0 0.0
    %333 = vmatprep.subr.mxu0 0.0
    %334 = vmatpush1.msra.mxu0 0.0
    %335 = vmatprep.subr.mxu0 0.0
    %336 = vmatpush1.msra.mxu0 0.0
    %337 = vmatprep.subr.mxu0 0.0
    %338 = vmatpush1.msra.mxu0 0.0
    %339 = vmatprep.subr.mxu0 0.0
    %340 = vmatpush1.msra.mxu0 0.0
    %341 = vmatprep.subr.mxu0 0.0
    %342 = vmatpush1.msra.mxu0 0.0
    %343 = vmatprep.subr.mxu0 0.0
    %344 = vmatpush1.msra.mxu0 0.0
    %345 = vmatprep.subr.mxu0 0.0
    %346 = vmatpush1.msra.mxu0 0.0
    %347 = vmatprep.subr.mxu0 0.0
    %348 = vmatpush1.msra.mxu0 0.0
    %349 = vmatprep.subr.mxu0 0.0
    %350 = vmatpush1.msra.mxu0 0.0
    %351 = vmatprep.subr.mxu0 0.0
    %352 = vmatpush1.msra.mxu0 0.0
    %353 = vmatprep.subr.mxu0 0.0
    %354 = vmatpush1.msra.mxu0 0.0
    %355 = vmatprep.subr.mxu0 0.0
    %356 = vmatpush1.msra.mxu0 0.0
    %357 = vmatprep.subr.mxu0 0.0
    %358 = vmatpush1.msra.mxu0 0.0
    %359 = vmatprep.subr.mxu0 0.0
    %360 = vmatpush1.msra.mxu0 0.0
    %361 = vmatprep.subr.mxu0 0.0
    %362 = vmatpush1.msra.mxu0 0.0
    %363 = vmatprep.subr.mxu0 0.0
    %364 = vmatpush1.msra.mxu0 0.0
    %365 = vmatprep.subr.mxu0 0.0
    %366 = vmatpush1.msra.mxu0 0.0
    %367 = vmatprep.subr.mxu0 0.0
    %368 = vmatpush1.msra.mxu0 0.0
    %369 = vmatprep.subr.mxu0 0.0
    %370 = vmatpush1.msra.mxu0 0.0
    %371 = vmatprep.subr.mxu0 0.0
    %372 = vmatpush1.msra.mxu0 0.0
    %373 = vmatprep.mubr.f32.mxu0 0.0
    %374 = vmatmul.mubr.f32.gmra.mrb[0].mxu0 %v307
    %v375 = vpop.f32.mrb[0].mxu0
    %v376 = vadd.f32 %v304, %v375
    %v377 = vpop.f32.mrb[0].mxu0
    %378 = vdwg.mxu0
    %v379 = vmul.f32 %v298, 1.442695
    %v380 = vpow.pop %v379
    %v381 = vmul.f32 %v79, %v380
    %v382 = vadd.f32 %v381, %v376
    %vm383 = vcmask 60416
    %v384 = vsel %vm383, %v298, 0.0
    %v385 = vrot.slane %v384, 4
    %v386 = vadd.f32 %v384, %v385
    %v387 = vrot.slane %v386, 2
    %v388 = vadd.f32 %v386, %v387
    %v389 = vrot.slane %v388, 1
    %v390 = vadd.f32 %v388, %v389
    %v391 = vadd.f32 %v81, %v390
    %v392 = vld [vmem:[%s9] sm:$0xf]
    %394 = vset.pattern.permute.xlu0 0
    %395 = vperm.xlu0 %394, %v392
    %v396 = vpop.permute.xlu0 %395
    %v398 = vmul.f32 %v78, %v396
    %v399 = vld [vmem:[%s11] sm:$0xf]
    %401 = vset.pattern.permute.xlu0 0
    %402 = vperm.xlu0 %401, %v399
    %v403 = vpop.permute.xlu0 %402
    %v405 = vadd.f32 %v398, %v403
    %v406 = vld [vmem:[%s10] sm:$0xf]
    %408 = vset.pattern.permute.xlu0 0
    %409 = vperm.xlu0 %408, %v406
    %v410 = vpop.permute.xlu0 %409
    %v412 = vmul.f32 %v382, %v410
    %v413 = vld [vmem:[%s12] sm:$0xf]
    %415 = vset.pattern.permute.xlu0 0
    %416 = vperm.xlu0 %415, %v413
    %v417 = vpop.permute.xlu0 %416
    %v419 = vadd.f32 %v412, %v417
    %v420 = vsel %vm85, %v419, %v83
    %v421 = vld [vmem:[%s13] sm:$0xff]
    %v422 = vld [vmem:[%s13 + $0x8] sm:$0xff]
    %v423 = vld [vmem:[%s13 + $0x10] sm:$0xff]
    %v424 = vld [vmem:[%s13 + $0x18] sm:$0xff]
    %v425 = vld [vmem:[%s14] sm:$0xff]
    %v426 = vld [vmem:[%s14 + $0x8] sm:$0xff]
    %v427 = vld [vmem:[%s14 + $0x10] sm:$0xff]
    %v428 = vld [vmem:[%s14 + $0x18] sm:$0xff]
    %430 = vset.pattern.permute.xlu0 0
    %431 = vperm.xlu0 %430, %v425
    %v432 = vpop.permute.xlu0 %431
    %435 = vset.pattern.permute.xlu0 0
    %436 = vperm.xlu0 %435, %v426
    %v437 = vpop.permute.xlu0 %436
    %440 = vset.pattern.permute.xlu0 0
    %441 = vperm.xlu0 %440, %v427
    %v442 = vpop.permute.xlu0 %441
    %445 = vset.pattern.permute.xlu0 0
    %446 = vperm.xlu0 %445, %v428
    %v447 = vpop.permute.xlu0 %446
    %v450 = vsel %vm115, %v421, 0
    %v453 = vsel %vm115, %v422, 0
    %v456 = vsel %vm115, %v423, 0
    %v459 = vsel %vm115, %v424, 0
    %461 = vmatprep.subr.mxu0 0.0
    %462 = vmatpush1.msra.mxu0 %v420
    %463 = vmatprep.subr.mxu0 0.0
    %464 = vmatpush1.msra.mxu0 0.0
    %465 = vmatprep.subr.mxu0 0.0
    %466 = vmatpush1.msra.mxu0 0.0
    %467 = vmatprep.subr.mxu0 0.0
    %468 = vmatpush1.msra.mxu0 0.0
    %469 = vmatprep.subr.mxu0 0.0
    %470 = vmatpush1.msra.mxu0 0.0
    %471 = vmatprep.subr.mxu0 0.0
    %472 = vmatpush1.msra.mxu0 0.0
    %473 = vmatprep.subr.mxu0 0.0
    %474 = vmatpush1.msra.mxu0 0.0
    %475 = vmatprep.subr.mxu0 0.0
    %476 = vmatpush1.msra.mxu0 0.0
    %477 = vmatprep.subr.mxu0 0.0
    %478 = vmatpush1.msra.mxu0 0.0
    %479 = vmatprep.subr.mxu0 0.0
    %480 = vmatpush1.msra.mxu0 0.0
    %481 = vmatprep.subr.mxu0 0.0
    %482 = vmatpush1.msra.mxu0 0.0
    %483 = vmatprep.subr.mxu0 0.0
    %484 = vmatpush1.msra.mxu0 0.0
    %485 = vmatprep.subr.mxu0 0.0
    %486 = vmatpush1.msra.mxu0 0.0
    %487 = vmatprep.subr.mxu0 0.0
    %488 = vmatpush1.msra.mxu0 0.0
    %489 = vmatprep.subr.mxu0 0.0
    %490 = vmatpush1.msra.mxu0 0.0
    %491 = vmatprep.subr.mxu0 0.0
    %492 = vmatpush1.msra.mxu0 0.0
    %493 = vmatprep.subr.mxu0 0.0
    %494 = vmatpush1.msra.mxu0 0.0
    %495 = vmatprep.subr.mxu0 0.0
    %496 = vmatpush1.msra.mxu0 0.0
    %497 = vmatprep.subr.mxu0 0.0
    %498 = vmatpush1.msra.mxu0 0.0
    %499 = vmatprep.subr.mxu0 0.0
    %500 = vmatpush1.msra.mxu0 0.0
    %501 = vmatprep.subr.mxu0 0.0
    %502 = vmatpush1.msra.mxu0 0.0
    %503 = vmatprep.subr.mxu0 0.0
    %504 = vmatpush1.msra.mxu0 0.0
    %505 = vmatprep.subr.mxu0 0.0
    %506 = vmatpush1.msra.mxu0 0.0
    %507 = vmatprep.subr.mxu0 0.0
    %508 = vmatpush1.msra.mxu0 0.0
    %509 = vmatprep.subr.mxu0 0.0
    %510 = vmatpush1.msra.mxu0 0.0
    %511 = vmatprep.subr.mxu0 0.0
    %512 = vmatpush1.msra.mxu0 0.0
    %513 = vmatprep.subr.mxu0 0.0
    %514 = vmatpush1.msra.mxu0 0.0
    %515 = vmatprep.subr.mxu0 0.0
    %516 = vmatpush1.msra.mxu0 0.0
    %517 = vmatprep.subr.mxu0 0.0
    %518 = vmatpush1.msra.mxu0 0.0
    %519 = vmatprep.subr.mxu0 0.0
    %520 = vmatpush1.msra.mxu0 0.0
    %521 = vmatprep.subr.mxu0 0.0
    %522 = vmatpush1.msra.mxu0 0.0
    %523 = vmatprep.subr.mxu0 0.0
    %524 = vmatpush1.msra.mxu0 0.0
    %525 = vmatprep.mubr.f32.mxu0 0.0
    %526 = vmatmul.mubr.f32.gmra.mrb[0].mxu0 %v450
    %v527 = vpop.f32.mrb[0].mxu0
    %v528 = vadd.f32 %v432, %v527
    %v529 = vpop.f32.mrb[0].mxu0
    %530 = vmatprep.mubr.f32.mxu0 0.0
    %531 = vmatmul.mubr.f32.gmra.mrb[0].mxu0 %v453
    %v532 = vpop.f32.mrb[0].mxu0
    %v533 = vadd.f32 %v437, %v532
    %v534 = vpop.f32.mrb[0].mxu0
    %535 = vmatprep.mubr.f32.mxu0 0.0
    %536 = vmatmul.mubr.f32.gmra.mrb[0].mxu0 %v456
    %v537 = vpop.f32.mrb[0].mxu0
    %v538 = vadd.f32 %v442, %v537
    %v539 = vpop.f32.mrb[0].mxu0
    %540 = vmatprep.mubr.f32.mxu0 0.0
    %541 = vmatmul.mubr.f32.gmra.mrb[0].mxu0 %v459
    %v542 = vpop.f32.mrb[0].mxu0
    %v543 = vadd.f32 %v447, %v542
    %v544 = vpop.f32.mrb[0].mxu0
    %545 = vdwg.mxu0
    %v546 = vtanh.pop %v528
    %v547 = vtanh.pop %v533
    %v548 = vtanh.pop %v538
    %v549 = vtanh.pop %v543
    %v550 = vld [vmem:[%s15] sm:$0xf]
    %v551 = vld [vmem:[%s16] sm:$0xf]
    %553 = vset.pattern.permute.xlu0 0
    %554 = vperm.xlu0 %553, %v551
    %v555 = vpop.permute.xlu0 %554
    %v558 = vsel %vm224, %v550, 0
    %560 = vmatprep.subr.mxu0 0.0
    %561 = vmatpush1.msra.mxu0 %v546
    %562 = vmatprep.subr.mxu0 0.0
    %563 = vmatpush1.msra.mxu0 %v547
    %564 = vmatprep.subr.mxu0 0.0
    %565 = vmatpush1.msra.mxu0 %v548
    %566 = vmatprep.subr.mxu0 0.0
    %567 = vmatpush1.msra.mxu0 %v549
    %568 = vmatprep.subr.mxu0 0.0
    %569 = vmatpush1.msra.mxu0 0.0
    %570 = vmatprep.subr.mxu0 0.0
    %571 = vmatpush1.msra.mxu0 0.0
    %572 = vmatprep.subr.mxu0 0.0
    %573 = vmatpush1.msra.mxu0 0.0
    %574 = vmatprep.subr.mxu0 0.0
    %575 = vmatpush1.msra.mxu0 0.0
    %576 = vmatprep.subr.mxu0 0.0
    %577 = vmatpush1.msra.mxu0 0.0
    %578 = vmatprep.subr.mxu0 0.0
    %579 = vmatpush1.msra.mxu0 0.0
    %580 = vmatprep.subr.mxu0 0.0
    %581 = vmatpush1.msra.mxu0 0.0
    %582 = vmatprep.subr.mxu0 0.0
    %583 = vmatpush1.msra.mxu0 0.0
    %584 = vmatprep.subr.mxu0 0.0
    %585 = vmatpush1.msra.mxu0 0.0
    %586 = vmatprep.subr.mxu0 0.0
    %587 = vmatpush1.msra.mxu0 0.0
    %588 = vmatprep.subr.mxu0 0.0
    %589 = vmatpush1.msra.mxu0 0.0
    %590 = vmatprep.subr.mxu0 0.0
    %591 = vmatpush1.msra.mxu0 0.0
    %592 = vmatprep.subr.mxu0 0.0
    %593 = vmatpush1.msra.mxu0 0.0
    %594 = vmatprep.subr.mxu0 0.0
    %595 = vmatpush1.msra.mxu0 0.0
    %596 = vmatprep.subr.mxu0 0.0
    %597 = vmatpush1.msra.mxu0 0.0
    %598 = vmatprep.subr.mxu0 0.0
    %599 = vmatpush1.msra.mxu0 0.0
    %600 = vmatprep.subr.mxu0 0.0
    %601 = vmatpush1.msra.mxu0 0.0
    %602 = vmatprep.subr.mxu0 0.0
    %603 = vmatpush1.msra.mxu0 0.0
    %604 = vmatprep.subr.mxu0 0.0
    %605 = vmatpush1.msra.mxu0 0.0
    %606 = vmatprep.subr.mxu0 0.0
    %607 = vmatpush1.msra.mxu0 0.0
    %608 = vmatprep.subr.mxu0 0.0
    %609 = vmatpush1.msra.mxu0 0.0
    %610 = vmatprep.subr.mxu0 0.0
    %611 = vmatpush1.msra.mxu0 0.0
    %612 = vmatprep.subr.mxu0 0.0
    %613 = vmatpush1.msra.mxu0 0.0
    %614 = vmatprep.subr.mxu0 0.0
    %615 = vmatpush1.msra.mxu0 0.0
    %616 = vmatprep.subr.mxu0 0.0
    %617 = vmatpush1.msra.mxu0 0.0
    %618 = vmatprep.subr.mxu0 0.0
    %619 = vmatpush1.msra.mxu0 0.0
    %620 = vmatprep.subr.mxu0 0.0
    %621 = vmatpush1.msra.mxu0 0.0
    %622 = vmatprep.subr.mxu0 0.0
    %623 = vmatpush1.msra.mxu0 0.0
    %624 = vmatprep.mubr.f32.mxu0 0.0
    %625 = vmatmul.mubr.f32.gmra.mrb[0].mxu0 %v558
    %v626 = vpop.f32.mrb[0].mxu0
    %v627 = vadd.f32 %v555, %v626
    %v628 = vpop.f32.mrb[0].mxu0
    %629 = vdwg.mxu0
    %v630 = vtanh.pop %v627
    %v631 = vld [vmem:[%s17] sm:$0xf]
    %v632 = vld [vmem:[%s18] sm:$0xf]
    %634 = vset.pattern.permute.xlu0 0
    %635 = vperm.xlu0 %634, %v632
    %v636 = vpop.permute.xlu0 %635
    %v639 = vsel %vm224, %v631, 0
    %641 = vmatprep.subr.mxu0 0.0
    %642 = vmatpush1.msra.mxu0 %v546
    %643 = vmatprep.subr.mxu0 0.0
    %644 = vmatpush1.msra.mxu0 %v547
    %645 = vmatprep.subr.mxu0 0.0
    %646 = vmatpush1.msra.mxu0 %v548
    %647 = vmatprep.subr.mxu0 0.0
    %648 = vmatpush1.msra.mxu0 %v549
    %649 = vmatprep.subr.mxu0 0.0
    %650 = vmatpush1.msra.mxu0 0.0
    %651 = vmatprep.subr.mxu0 0.0
    %652 = vmatpush1.msra.mxu0 0.0
    %653 = vmatprep.subr.mxu0 0.0
    %654 = vmatpush1.msra.mxu0 0.0
    %655 = vmatprep.subr.mxu0 0.0
    %656 = vmatpush1.msra.mxu0 0.0
    %657 = vmatprep.subr.mxu0 0.0
    %658 = vmatpush1.msra.mxu0 0.0
    %659 = vmatprep.subr.mxu0 0.0
    %660 = vmatpush1.msra.mxu0 0.0
    %661 = vmatprep.subr.mxu0 0.0
    %662 = vmatpush1.msra.mxu0 0.0
    %663 = vmatprep.subr.mxu0 0.0
    %664 = vmatpush1.msra.mxu0 0.0
    %665 = vmatprep.subr.mxu0 0.0
    %666 = vmatpush1.msra.mxu0 0.0
    %667 = vmatprep.subr.mxu0 0.0
    %668 = vmatpush1.msra.mxu0 0.0
    %669 = vmatprep.subr.mxu0 0.0
    %670 = vmatpush1.msra.mxu0 0.0
    %671 = vmatprep.subr.mxu0 0.0
    %672 = vmatpush1.msra.mxu0 0.0
    %673 = vmatprep.subr.mxu0 0.0
    %674 = vmatpush1.msra.mxu0 0.0
    %675 = vmatprep.subr.mxu0 0.0
    %676 = vmatpush1.msra.mxu0 0.0
    %677 = vmatprep.subr.mxu0 0.0
    %678 = vmatpush1.msra.mxu0 0.0
    %679 = vmatprep.subr.mxu0 0.0
    %680 = vmatpush1.msra.mxu0 0.0
    %681 = vmatprep.subr.mxu0 0.0
    %682 = vmatpush1.msra.mxu0 0.0
    %683 = vmatprep.subr.mxu0 0.0
    %684 = vmatpush1.msra.mxu0 0.0
    %685 = vmatprep.subr.mxu0 0.0
    %686 = vmatpush1.msra.mxu0 0.0
    %687 = vmatprep.subr.mxu0 0.0
    %688 = vmatpush1.msra.mxu0 0.0
    %689 = vmatprep.subr.mxu0 0.0
    %690 = vmatpush1.msra.mxu0 0.0
    %691 = vmatprep.subr.mxu0 0.0
    %692 = vmatpush1.msra.mxu0 0.0
    %693 = vmatprep.subr.mxu0 0.0
    %694 = vmatpush1.msra.mxu0 0.0
    %695 = vmatprep.subr.mxu0 0.0
    %696 = vmatpush1.msra.mxu0 0.0
    %697 = vmatprep.subr.mxu0 0.0
    %698 = vmatpush1.msra.mxu0 0.0
    %699 = vmatprep.subr.mxu0 0.0
    %700 = vmatpush1.msra.mxu0 0.0
    %701 = vmatprep.subr.mxu0 0.0
    %702 = vmatpush1.msra.mxu0 0.0
    %703 = vmatprep.subr.mxu0 0.0
    %704 = vmatpush1.msra.mxu0 0.0
    %705 = vmatprep.mubr.f32.mxu0 0.0
    %706 = vmatmul.mubr.f32.gmra.mrb[0].mxu0 %v639
    %v707 = vpop.f32.mrb[0].mxu0
    %v708 = vadd.f32 %v636, %v707
    %v709 = vpop.f32.mrb[0].mxu0
    %710 = vdwg.mxu0
    %v711 = vmul.f32 %v630, 1.442695
    %v712 = vpow.pop %v711
    %v713 = vmul.f32 %v405, %v712
    %v714 = vadd.f32 %v713, %v708
    %v715 = vsel %vm383, %v630, 0.0
    %v716 = vrot.slane %v715, 4
    %v717 = vadd.f32 %v715, %v716
    %v718 = vrot.slane %v717, 2
    %v719 = vadd.f32 %v717, %v718
    %v720 = vrot.slane %v719, 1
    %v721 = vadd.f32 %v719, %v720
    %v722 = vadd.f32 %v391, %v721
    %v723 = vld [vmem:[%s19] sm:$0xf]
    %725 = vset.pattern.permute.xlu0 0
    %726 = vperm.xlu0 %725, %v723
    %v727 = vpop.permute.xlu0 %726
    %v729 = vmul.f32 %v714, %v727
    %v730 = vld [vmem:[%s21] sm:$0xf]
    %732 = vset.pattern.permute.xlu0 0
    %733 = vperm.xlu0 %732, %v730
    %v734 = vpop.permute.xlu0 %733
    %v736 = vadd.f32 %v729, %v734
    %v737 = vld [vmem:[%s20] sm:$0xf]
    %739 = vset.pattern.permute.xlu0 0
    %740 = vperm.xlu0 %739, %v737
    %v741 = vpop.permute.xlu0 %740
    %v743 = vmul.f32 %v419, %v741
    %v744 = vld [vmem:[%s22] sm:$0xf]
    %746 = vset.pattern.permute.xlu0 0
    %747 = vperm.xlu0 %746, %v744
    %v748 = vpop.permute.xlu0 %747
    %v750 = vadd.f32 %v743, %v748
    %v751 = vadd.f32 %v722, -1.0412791
    %752 = vst.msk [vmem:[#allocation2] sm:$0xf] %vm383, %v736
    %753 = vst.msk [vmem:[#allocation2 + $0x4] sm:$0xf] %vm383, %v750
    %vm754 = vcmask 57344
    %755 = vst.msk [vmem:[#allocation4] sm:$0x1] %vm754, %v751
    // Predicated region
    $region94: #{tpu_custom_call.1} parent=1 // pred_check
      _
    $region95: #{tpu_custom_call.1} parent=1 // pred_check_branch
      %757 = sbr.rel (0) target = $region97
    $region96: #{tpu_custom_call.1} parent=1 // pred_region
      %s759 = ssub.s32 128, 128
      %760 = vsyncadd [#allocation3], %s759
      %s762 = sshll.u32 [#allocation2], 4
      %s763 = int_to_ptr.vmem [resolvable:$true] %s762
      %765 = dma.vmem_to_hbm [thread:$0]  %s763, 128, %s23, [#allocation3]
    $region97: #{tpu_custom_call.1} parent=1 // pred_fallthru
      _
    // Predicated region
    $region98: #{tpu_custom_call.1} parent=1 // pred_check
      _
    $region99: #{tpu_custom_call.1} parent=1 // pred_check_branch
      %767 = sbr.rel (0) target = $region101
    $region100: #{tpu_custom_call.1} parent=1 // pred_region
      %s769 = ssub.s32 16, 16
      %770 = vsyncadd [#allocation5], %s769
      %s772 = sshll.u32 [#allocation4], 4
      %s773 = int_to_ptr.vmem [resolvable:$true] %s772
      %775 = dma.vmem_to_hbm [thread:$0]  %s773, 16, %s24, [#allocation5]
    $region101: #{tpu_custom_call.1} parent=1 // pred_fallthru
      _
    // Predicated region
    $region102: #{tpu_custom_call.1} parent=1 // pred_check
      _
    $region103: #{tpu_custom_call.1} parent=1 // pred_check_branch
      %777 = sbr.rel (0) target = $region105
    $region104: #{tpu_custom_call.1} parent=1 // pred_region
      %778 = dma.done [#allocation3], 128
    $region105: #{tpu_custom_call.1} parent=1 // pred_fallthru
      _
    // Predicated region
    $region106: #{tpu_custom_call.1} parent=1 // pred_check
      _
    $region107: #{tpu_custom_call.1} parent=1 // pred_check_branch
      %780 = sbr.rel (0) target = $region109
    $region108: #{tpu_custom_call.1} parent=1 // pred_region
      %781 = dma.done [#allocation5], 16
    $region109: #{tpu_custom_call.1} parent=1 // pred_fallthru
      _
    %782 = vsyncpa [#allocation3], 1
    %783 = vsyncpa [#allocation5], 1

</llo_original>
